<compile_context>
chip_gen: v5e
topology: v5e:2x2
jax: 0.10.0
libtpu: 0.0.40
codegen_flags: <defaults>
</compile_context>

<pallas_src>
import functools

import jax
import jax.numpy as jnp
from jax.experimental import pallas as pl
from jax.experimental.pallas import tpu as pltpu

Z_DIM = 128
HIDDEN = 2 * Z_DIM            # 256
_NEG_SLOPE = 0.01             # nn.LeakyReLU() default negative_slope


def _leaky_relu(x):
    return jnp.where(x > 0, x, _NEG_SLOPE * x)


def _round_up(n, m):
    return -(-n // m) * m


# ----------------------------------------------------------------------------
# Kernel: one row-tile of the fused 3-layer MLP.
#   x_ref : (tm, in_pad)            f32   (row tile of the padded input)
#   w_ref : (in_pad + 2H, H)        bf16  rows [0:in_pad]          = W1 (in,out)
#                                         rows [in_pad:in_pad+H]   = W2
#                                         rows [in_pad+H:in_pad+2H, :Z] = W3
#   b_ref : (8, H)                  f32   row0 = b1, row1 = b2, row2[:Z] = b3
#   o_ref : (tm, Z)                 f32
# ----------------------------------------------------------------------------
def _param_encoder_kernel(in_pad, x_ref, w_ref, b_ref, o_ref):
    H = HIDDEN
    # Static slab views (zero-cost carving of the packed slabs).
    w1 = w_ref[0:in_pad, :]
    w2 = w_ref[in_pad:in_pad + H, :]
    w3 = w_ref[in_pad + H:in_pad + 2 * H, 0:Z_DIM]
    b1 = b_ref[0:1, :]
    b2 = b_ref[1:2, :]
    b3 = b_ref[2:3, 0:Z_DIM]

    # fc1 + LeakyReLU  (bf16 MXU inputs, f32 accumulation / activations)
    x = x_ref[...].astype(jnp.bfloat16)
    h = jnp.dot(x, w1, preferred_element_type=jnp.float32) + b1
    h = _leaky_relu(h)
    # fc2 + LeakyReLU
    h = jnp.dot(h.astype(jnp.bfloat16), w2,
                preferred_element_type=jnp.float32) + b2
    h = _leaky_relu(h)
    # fc3 (no activation)
    y = jnp.dot(h.astype(jnp.bfloat16), w3,
                preferred_element_type=jnp.float32) + b3
    o_ref[...] = y.astype(o_ref.dtype)


# ----------------------------------------------------------------------------
# One-time weight packing (done outside the hot path).
# Takes PyTorch nn.Linear layout: w* is (out, in), b* is (out,).
# ----------------------------------------------------------------------------
def pack_params(w1, b1, w2, b2, w3, b3):
    out1, in_c = w1.shape
    assert out1 == HIDDEN and w2.shape == (HIDDEN, HIDDEN)
    assert w3.shape == (Z_DIM, HIDDEN)
    in_pad = _round_up(in_c, 16)   # bf16 sublane-pack aligned

    w1_t = jnp.zeros((in_pad, HIDDEN), jnp.float32).at[:in_c, :].set(
        jnp.asarray(w1, jnp.float32).T)
    w2_t = jnp.asarray(w2, jnp.float32).T
    w3_t = jnp.zeros((HIDDEN, HIDDEN), jnp.float32).at[:, :Z_DIM].set(
        jnp.asarray(w3, jnp.float32).T)
    w_slab = jnp.concatenate([w1_t, w2_t, w3_t], axis=0).astype(jnp.bfloat16)

    b_slab = jnp.zeros((8, HIDDEN), jnp.float32)
    b_slab = b_slab.at[0, :].set(jnp.asarray(b1, jnp.float32))
    b_slab = b_slab.at[1, :].set(jnp.asarray(b2, jnp.float32))
    b_slab = b_slab.at[2, :Z_DIM].set(jnp.asarray(b3, jnp.float32))
    return dict(w=w_slab, b=b_slab, in_c=in_c, in_pad=in_pad)


# ----------------------------------------------------------------------------
# Forward wrapper (torch.hstack + padding are host/XLA-side glue).
# x_list may hold any number of rows; rows are tiled in chunks of up to 256
# so large batched invocations reuse the VMEM-resident weights per grid step.
# ----------------------------------------------------------------------------
def param_encoder_forward(x_list, packed, *, max_tile_rows=256):
    x = jnp.concatenate([jnp.asarray(v, jnp.float32) for v in x_list],
                        axis=-1)                               # torch.hstack
    B, in_c = x.shape
    if in_c != packed["in_c"]:
        raise ValueError(f"expected in_c={packed['in_c']}, got {in_c}")
    in_pad = packed["in_pad"]

    b_pad = _round_up(max(B, 8), 8)
    tm = min(max_tile_rows, b_pad)
    b_pad = _round_up(b_pad, tm)
    x_p = jnp.zeros((b_pad, in_pad), jnp.float32).at[:B, :in_c].set(x)

    w_slab, b_slab = packed["w"], packed["b"]
    grid = (b_pad // tm,)

    flops = 2 * b_pad * (in_pad * HIDDEN + HIDDEN * HIDDEN + HIDDEN * Z_DIM)
    bytes_accessed = (w_slab.size * 2 + b_slab.size * 4
                      + x_p.size * 4 + b_pad * Z_DIM * 4)

    out = pl.pallas_call(
        functools.partial(_param_encoder_kernel, in_pad),
        out_shape=jax.ShapeDtypeStruct((b_pad, Z_DIM), jnp.float32),
        grid=grid,
        in_specs=[
            pl.BlockSpec((tm, in_pad), lambda i: (i, 0)),   # x row tile
            pl.BlockSpec(w_slab.shape, lambda i: (0, 0)),   # resident weights
            pl.BlockSpec(b_slab.shape, lambda i: (0, 0)),   # resident biases
        ],
        out_specs=pl.BlockSpec((tm, Z_DIM), lambda i: (i, 0)),
        compiler_params=pltpu.CompilerParams(
            dimension_semantics=("parallel",)),
        cost_estimate=pl.CostEstimate(
            flops=flops, transcendentals=0, bytes_accessed=bytes_accessed),
    )(x_p, w_slab, b_slab)
    return out[:B]


# ----------------------------------------------------------------------------
# PyTorch-style init (nn.Linear default: U(-1/sqrt(fan_in), +1/sqrt(fan_in))),
# stored in PyTorch layout (out, in) to exercise the pack_params transpose.
# ----------------------------------------------------------------------------
def _init_params_torch_layout(key, in_c):
    def lin(k, fan_in, fan_out):
        kw, kb = jax.random.split(k)
        bound = 1.0 / float(fan_in) ** 0.5
        w = jax.random.uniform(kw, (fan_out, fan_in), jnp.float32, -bound, bound)
        b = jax.random.uniform(kb, (fan_out,), jnp.float32, -bound, bound)
        return w, b

    k1, k2, k3 = jax.random.split(key, 3)
    w1, b1 = lin(k1, in_c, HIDDEN)
    w2, b2 = lin(k2, HIDDEN, HIDDEN)
    w3, b3 = lin(k3, HIDDEN, Z_DIM)
    return w1, b1, w2, b2, w3, b3


if __name__ == "__main__":
    key = jax.random.PRNGKey(0)

    # ShapeInfo('chair'): scalar(3) + type(4) + type(4) + type(4) -> in_c = 15
    param_widths = [3, 4, 4, 4]
    in_c = sum(param_widths)
    B = 8

    kx, kp = jax.random.split(key)
    xkeys = jax.random.split(kx, len(param_widths))
    x_list = [jax.random.uniform(k, (B, n), jnp.float32)
              for k, n in zip(xkeys, param_widths)]
    w1, b1, w2, b2, w3, b3 = _init_params_torch_layout(kp, in_c)
    packed = pack_params(w1, b1, w2, b2, w3, b3)

    out = param_encoder_forward(x_list, packed)
    jax.block_until_ready(out)
    assert out.shape == (B, Z_DIM), out.shape

    # --- references -----------------------------------------------------
    x = jnp.concatenate(x_list, axis=-1)

    # (a) bf16-weight reference (same math as the kernel) -> tight check.
    in_pad = packed["in_pad"]
    xp = jnp.zeros((B, in_pad), jnp.float32).at[:, :in_c].set(x)
    wS, bS = packed["w"], packed["b"]
    h = _leaky_relu(jnp.dot(xp.astype(jnp.bfloat16), wS[:in_pad],
                            preferred_element_type=jnp.float32) + bS[0:1])
    h = _leaky_relu(jnp.dot(h.astype(jnp.bfloat16), wS[in_pad:in_pad + HIDDEN],
                            preferred_element_type=jnp.float32) + bS[1:2])
    ref_bf16 = jnp.dot(h.astype(jnp.bfloat16),
                       wS[in_pad + HIDDEN:, :Z_DIM],
                       preferred_element_type=jnp.float32) + bS[2:3, :Z_DIM]
    assert jnp.allclose(out, ref_bf16, rtol=2e-3, atol=2e-3), \
        float(jnp.max(jnp.abs(out - ref_bf16)))

    # (b) full-f32 PyTorch-semantics reference -> loose check (bf16 weights).
    hf = _leaky_relu(x @ w1.T + b1)
    hf = _leaky_relu(hf @ w2.T + b2)
    ref_f32 = hf @ w3.T + b3
    assert jnp.allclose(out, ref_f32, rtol=5e-2, atol=5e-2), \
        float(jnp.max(jnp.abs(out - ref_f32)))

    print("KERNEL_OK")
</pallas_src>

<mosaic_0001>
module attributes {stable_mosaic.version = 11 : i64} {
  func.func @_param_encoder_kernel(%arg0: i32, %arg1: memref<8x16xf32, #tpu.memory_space<vmem>>, %arg2: memref<528x256xbf16, #tpu.memory_space<vmem>>, %arg3: memref<8x256xf32, #tpu.memory_space<vmem>>, %arg4: memref<8x128xf32, #tpu.memory_space<vmem>>) attributes {dimension_semantics = [#tpu.dimension_semantics<parallel>], iteration_bounds = array<i64: 1>, scalar_prefetch = 0 : i64, scratch_operands = 0 : i64, tpu.core_type = #tpu.core_type<tc>, window_params = [{transform_indices = @transform_0, window_bounds = array<i64: 8, 16>}, {pipeline_mode = #tpu.pipeline_mode<synchronous>, transform_indices = @transform_1, window_bounds = array<i64: 528, 256>}, {pipeline_mode = #tpu.pipeline_mode<synchronous>, transform_indices = @transform_2, window_bounds = array<i64: 8, 256>}, {transform_indices = @transform_3, window_bounds = array<i64: 8, 128>}]} {
    %c0 = arith.constant 0 : index
    %c0_0 = arith.constant 0 : index
    %0 = vector.load %arg2[%c0, %c0_0] : memref<528x256xbf16, #tpu.memory_space<vmem>>, vector<16x256xbf16>
    %c16 = arith.constant 16 : index
    %c0_1 = arith.constant 0 : index
    %1 = vector.load %arg2[%c16, %c0_1] : memref<528x256xbf16, #tpu.memory_space<vmem>>, vector<256x256xbf16>
    %c272 = arith.constant 272 : index
    %c0_2 = arith.constant 0 : index
    %2 = vector.load %arg2[%c272, %c0_2] : memref<528x256xbf16, #tpu.memory_space<vmem>>, vector<256x128xbf16>
    %c0_3 = arith.constant 0 : index
    %c0_4 = arith.constant 0 : index
    %3 = vector.load %arg3[%c0_3, %c0_4] : memref<8x256xf32, #tpu.memory_space<vmem>>, vector<1x256xf32>
    %c1 = arith.constant 1 : index
    %c0_5 = arith.constant 0 : index
    %4 = vector.load %arg3[%c1, %c0_5] : memref<8x256xf32, #tpu.memory_space<vmem>>, vector<1x256xf32>
    %c2 = arith.constant 2 : index
    %c0_6 = arith.constant 0 : index
    %5 = vector.load %arg3[%c2, %c0_6] : memref<8x256xf32, #tpu.memory_space<vmem>>, vector<1x128xf32>
    %c0_7 = arith.constant 0 : index
    %c0_8 = arith.constant 0 : index
    %6 = vector.load %arg1[%c0_7, %c0_8] : memref<8x16xf32, #tpu.memory_space<vmem>>, vector<8x16xf32>
    %7 = arith.truncf %6 : vector<8x16xf32> to vector<8x16xbf16>
    %cst = arith.constant dense<0.000000e+00> : vector<8x256xf32>
    %8 = tpu.matmul %7, %0, %cst {dimension_numbers = #tpu.dot_dimension_numbers<[1], [0], [0], [1], [0, 0, 1, 1], [], []>} : vector<8x16xbf16>, vector<16x256xbf16>, vector<8x256xf32> -> vector<8x256xf32>
    %9 = vector.broadcast %3 : vector<1x256xf32> to vector<8x256xf32>
    %10 = arith.addf %8, %9 : vector<8x256xf32>
    %cst_9 = arith.constant 0.000000e+00 : f32
    %11 = vector.broadcast %cst_9 : f32 to vector<8x256xf32>
    %12 = arith.cmpf ogt, %10, %11 : vector<8x256xf32>
    %cst_10 = arith.constant 0.00999999977 : f32
    %13 = vector.broadcast %cst_10 : f32 to vector<8x256xf32>
    %14 = arith.mulf %13, %10 : vector<8x256xf32>
    %15 = arith.select %12, %10, %14 : vector<8x256xi1>, vector<8x256xf32>
    %16 = arith.truncf %15 : vector<8x256xf32> to vector<8x256xbf16>
    %cst_11 = arith.constant dense<0.000000e+00> : vector<8x256xf32>
    %17 = tpu.matmul %16, %1, %cst_11 {dimension_numbers = #tpu.dot_dimension_numbers<[1], [0], [0], [1], [0, 0, 1, 1], [], []>} : vector<8x256xbf16>, vector<256x256xbf16>, vector<8x256xf32> -> vector<8x256xf32>
    %18 = vector.broadcast %4 : vector<1x256xf32> to vector<8x256xf32>
    %19 = arith.addf %17, %18 : vector<8x256xf32>
    %cst_12 = arith.constant 0.000000e+00 : f32
    %20 = vector.broadcast %cst_12 : f32 to vector<8x256xf32>
    %21 = arith.cmpf ogt, %19, %20 : vector<8x256xf32>
    %cst_13 = arith.constant 0.00999999977 : f32
    %22 = vector.broadcast %cst_13 : f32 to vector<8x256xf32>
    %23 = arith.mulf %22, %19 : vector<8x256xf32>
    %24 = arith.select %21, %19, %23 : vector<8x256xi1>, vector<8x256xf32>
    %25 = arith.truncf %24 : vector<8x256xf32> to vector<8x256xbf16>
    %cst_14 = arith.constant dense<0.000000e+00> : vector<8x128xf32>
    %26 = tpu.matmul %25, %2, %cst_14 {dimension_numbers = #tpu.dot_dimension_numbers<[1], [0], [0], [1], [0, 0, 1, 1], [], []>} : vector<8x256xbf16>, vector<256x128xbf16>, vector<8x128xf32> -> vector<8x128xf32>
    %27 = vector.broadcast %5 : vector<1x128xf32> to vector<8x128xf32>
    %28 = arith.addf %26, %27 : vector<8x128xf32>
    %c0_15 = arith.constant 0 : index
    %c0_16 = arith.constant 0 : index
    %29 = vector.load %arg4[%c0_15, %c0_16] : memref<8x128xf32, #tpu.memory_space<vmem>>, vector<8x128xf32>
    tpu.vector_store %arg4[%c0_15, %c0_16], %28 {strides = array<i32>} : memref<8x128xf32, #tpu.memory_space<vmem>>, vector<8x128xf32>,
    return
  }
  func.func @transform_0(%arg0: i32) -> (i32, i32) {
    %c0_i32 = arith.constant 0 : i32
    %c0_i32_0 = arith.constant 0 : i32
    return %arg0, %c0_i32 : i32, i32
  }
  func.func @transform_1(%arg0: i32) -> (i32, i32) {
    %c0_i32 = arith.constant 0 : i32
    %c0_i32_0 = arith.constant 0 : i32
    %c0_i32_1 = arith.constant 0 : i32
    return %c0_i32, %c0_i32_0 : i32, i32
  }
  func.func @transform_2(%arg0: i32) -> (i32, i32) {
    %c0_i32 = arith.constant 0 : i32
    %c0_i32_0 = arith.constant 0 : i32
    %c0_i32_1 = arith.constant 0 : i32
    return %c0_i32, %c0_i32_0 : i32, i32
  }
  func.func @transform_3(%arg0: i32) -> (i32, i32) {
    %c0_i32 = arith.constant 0 : i32
    %c0_i32_0 = arith.constant 0 : i32
    return %arg0, %c0_i32 : i32, i32
  }
}

</mosaic_0001>

<llo_original>
// kernel: tpu_custom_call.1
$region0: #{tpu_custom_call.1}
  #allocation0 [shape = 'u32[]', space=smem, size = 0x4, offset = 0x4, fixed_abs, tag = 'smem constant byte address 0x4 - core index']
  #allocation1 [shape = 'u32[72,128]{1,0:T(1,128)}', space=vmem, size = 0x9000, scoped, tag = 'internal scratch']
  %s0 = inlined_call_operand.hbm [shape: f32[8,16], index: 0, kind: input, shape index: {}]
  %s1 = inlined_call_operand.hbm [shape: bf16[528,256], index: 1, kind: input, shape index: {}]
  %s2 = inlined_call_operand.hbm [shape: f32[8,256], index: 2, kind: input, shape index: {}]
  %s3 = inlined_call_operand.hbm [shape: f32[8,128], index: 3, kind: output, shape index: {}]
  %s4 = sld [smem:[#allocation0]]
  $region34: #{tpu_custom_call.1} parent=0
    _
  %s6 = ssub.s32 1, %s4
  %s7 = scalar_select 0, %s6, %s4
  $region1: #{tpu_custom_call.1} parent=0
    #allocation2 [shape = 'u8[4096]{0}', space=vmem, size = 0x1000, scoped, tag = 'input window, operand 0, single buffered']
    #allocation3 [shape = 's32[1]{0}', space=sflag, size = 0x4, scoped, tag = 'scoped memory for tpu_custom_call.1']
    #allocation4 [shape = 's32[1]{0}', space=sflag, size = 0x4, scoped, tag = 'scoped memory for tpu_custom_call.1']
    #allocation5 [shape = 'u8[270336]{0}', space=vmem, size = 0x42000, scoped, tag = 'input window, operand 1, single buffered']
    #allocation6 [shape = 's32[1]{0}', space=sflag, size = 0x4, scoped, tag = 'scoped memory for tpu_custom_call.1']
    #allocation7 [shape = 'u8[8192]{0}', space=vmem, size = 0x2000, scoped, tag = 'input window, operand 2, single buffered']
    #allocation8 [shape = 'u8[4096]{0}', space=vmem, size = 0x1000, scoped, tag = 'output window, operand 0, single buffered']
    %8 = vsyncpa [#allocation3], 0
    %9 = vsyncpa [#allocation6], 0
    %10 = vsyncpa [#allocation4], 0
    // Predicated region
    $region2: #{tpu_custom_call.1} parent=1 // pred_check
      _
    $region3: #{tpu_custom_call.1} parent=1 // pred_check_branch
      %12 = sbr.rel (0) target = $region5
    $region4: #{tpu_custom_call.1} parent=1 // pred_region
      %14 = vsyncadd [#allocation3], 0
      %s16 = sshll.u32 %s0, 4
      %s17 = int_to_ptr.hbm [resolvable:$true] %s16
      %s18 = sshll.u32 [#allocation2], 4
      %s19 = int_to_ptr.vmem [resolvable:$true] %s18
      %21 = dma.hbm_to_vmem [thread:$0]  %s17, 128, %s19, [#allocation3]
    $region5: #{tpu_custom_call.1} parent=1 // pred_fallthru
      _
    // Predicated region
    $region6: #{tpu_custom_call.1} parent=1 // pred_check
      _
    $region7: #{tpu_custom_call.1} parent=1 // pred_check_branch
      %23 = sbr.rel (0) target = $region9
    $region8: #{tpu_custom_call.1} parent=1 // pred_region
      %25 = vsyncadd [#allocation6], 0
      %s26 = sshll.u32 %s1, 4
      %s27 = int_to_ptr.hbm [resolvable:$true] %s26
      %s28 = sshll.u32 [#allocation5], 4
      %s29 = int_to_ptr.vmem [resolvable:$true] %s28
      %34 = dma.hbm_to_vmem [thread:$0]  %s27, 8448, %s29, [#allocation6], 128, 128, 8
    $region9: #{tpu_custom_call.1} parent=1 // pred_fallthru
      _
    // Predicated region
    $region10: #{tpu_custom_call.1} parent=1 // pred_check
      _
    $region11: #{tpu_custom_call.1} parent=1 // pred_check_branch
      %36 = sbr.rel (0) target = $region13
    $region12: #{tpu_custom_call.1} parent=1 // pred_region
      %38 = vsyncadd [#allocation6], 0
      %s40 = sshll.u32 %s2, 4
      %s41 = int_to_ptr.hbm [resolvable:$true] %s40
      %s42 = sshll.u32 [#allocation7], 4
      %s43 = int_to_ptr.vmem [resolvable:$true] %s42
      %45 = dma.hbm_to_vmem [thread:$0]  %s41, 256, %s43, [#allocation6]
    $region13: #{tpu_custom_call.1} parent=1 // pred_fallthru
      _
    // Predicated region
    $region14: #{tpu_custom_call.1} parent=1 // pred_check
      _
    $region15: #{tpu_custom_call.1} parent=1 // pred_check_branch
      %47 = sbr.rel (0) target = $region17
    $region16: #{tpu_custom_call.1} parent=1 // pred_region
      %49 = dma.done [#allocation3], 128
    $region17: #{tpu_custom_call.1} parent=1 // pred_fallthru
      _
    // Predicated region
    $region18: #{tpu_custom_call.1} parent=1 // pred_check
      _
    $region19: #{tpu_custom_call.1} parent=1 // pred_check_branch
      %51 = sbr.rel (0) target = $region21
    $region20: #{tpu_custom_call.1} parent=1 // pred_region
      %53 = dma.done [#allocation6], 8448
    $region21: #{tpu_custom_call.1} parent=1 // pred_fallthru
      _
    // Predicated region
    $region22: #{tpu_custom_call.1} parent=1 // pred_check
      _
    $region23: #{tpu_custom_call.1} parent=1 // pred_check_branch
      %55 = sbr.rel (0) target = $region25
    $region24: #{tpu_custom_call.1} parent=1 // pred_region
      %57 = dma.done [#allocation6], 256
    $region25: #{tpu_custom_call.1} parent=1 // pred_fallthru
      _
    %v59 = vld [vmem:[#allocation5] sm:$0xff]
    %v60 = vld [vmem:[#allocation5 + $0x8] sm:$0xff]
    %v61 = vld [vmem:[#allocation5 + $0x10] sm:$0xff]
    %v62 = vld [vmem:[#allocation5 + $0x18] sm:$0xff]
    %v63 = vld [vmem:[#allocation5 + $0x20] sm:$0xff]
    %v64 = vld [vmem:[#allocation5 + $0x28] sm:$0xff]
    %v65 = vld [vmem:[#allocation5 + $0x30] sm:$0xff]
    %v66 = vld [vmem:[#allocation5 + $0x38] sm:$0xff]
    %v67 = vld [vmem:[#allocation5 + $0x40] sm:$0xff]
    %v68 = vld [vmem:[#allocation5 + $0x48] sm:$0xff]
    %v69 = vld [vmem:[#allocation5 + $0x50] sm:$0xff]
    %v70 = vld [vmem:[#allocation5 + $0x58] sm:$0xff]
    %v71 = vld [vmem:[#allocation5 + $0x60] sm:$0xff]
    %v72 = vld [vmem:[#allocation5 + $0x68] sm:$0xff]
    %v73 = vld [vmem:[#allocation5 + $0x70] sm:$0xff]
    %v74 = vld [vmem:[#allocation5 + $0x78] sm:$0xff]
    %v75 = vld [vmem:[#allocation5 + $0x80] sm:$0xff]
    %v76 = vld [vmem:[#allocation5 + $0x88] sm:$0xff]
    %v77 = vld [vmem:[#allocation5 + $0x90] sm:$0xff]
    %v78 = vld [vmem:[#allocation5 + $0x98] sm:$0xff]
    %v79 = vld [vmem:[#allocation5 + $0xa0] sm:$0xff]
    %v80 = vld [vmem:[#allocation5 + $0xa8] sm:$0xff]
    %v81 = vld [vmem:[#allocation5 + $0xb0] sm:$0xff]
    %v82 = vld [vmem:[#allocation5 + $0xb8] sm:$0xff]
    %v83 = vld [vmem:[#allocation5 + $0xc0] sm:$0xff]
    %v84 = vld [vmem:[#allocation5 + $0xc8] sm:$0xff]
    %v85 = vld [vmem:[#allocation5 + $0xd0] sm:$0xff]
    %v86 = vld [vmem:[#allocation5 + $0xd8] sm:$0xff]
    %v87 = vld [vmem:[#allocation5 + $0xe0] sm:$0xff]
    %v88 = vld [vmem:[#allocation5 + $0xe8] sm:$0xff]
    %v89 = vld [vmem:[#allocation5 + $0xf0] sm:$0xff]
    %v90 = vld [vmem:[#allocation5 + $0xf8] sm:$0xff]
    %v91 = vld [vmem:[#allocation5 + $0x100] sm:$0xff]
    %v92 = vld [vmem:[#allocation5 + $0x108] sm:$0xff]
    %v93 = vld [vmem:[#allocation5 + $0x110] sm:$0xf]
    %v94 = vld [vmem:[#allocation5 + $0x118] sm:$0xf]
    %v95 = vld [vmem:[#allocation5 + $0x120] sm:$0xf]
    %v96 = vld [vmem:[#allocation5 + $0x128] sm:$0xf]
    %v97 = vld [vmem:[#allocation5 + $0x130] sm:$0xf]
    %v98 = vld [vmem:[#allocation5 + $0x138] sm:$0xf]
    %v99 = vld [vmem:[#allocation5 + $0x140] sm:$0xf]
    %v100 = vld [vmem:[#allocation5 + $0x148] sm:$0xf]
    %v101 = vld [vmem:[#allocation5 + $0x150] sm:$0xf]
    %v102 = vld [vmem:[#allocation5 + $0x158] sm:$0xf]
    %v103 = vld [vmem:[#allocation5 + $0x160] sm:$0xf]
    %v104 = vld [vmem:[#allocation5 + $0x168] sm:$0xf]
    %v105 = vld [vmem:[#allocation5 + $0x170] sm:$0xf]
    %v106 = vld [vmem:[#allocation5 + $0x178] sm:$0xf]
    %v107 = vld [vmem:[#allocation5 + $0x180] sm:$0xf]
    %v108 = vld [vmem:[#allocation5 + $0x188] sm:$0xf]
    %v109 = vld [vmem:[#allocation5 + $0x190] sm:$0xf]
    %v110 = vld [vmem:[#allocation5 + $0x198] sm:$0xf]
    %v111 = vld [vmem:[#allocation5 + $0x1a0] sm:$0xf]
    %v112 = vld [vmem:[#allocation5 + $0x1a8] sm:$0xf]
    %v113 = vld [vmem:[#allocation5 + $0x1b0] sm:$0xf]
    %v114 = vld [vmem:[#allocation5 + $0x1b8] sm:$0xf]
    %v115 = vld [vmem:[#allocation5 + $0x1c0] sm:$0xf]
    %v116 = vld [vmem:[#allocation5 + $0x1c8] sm:$0xf]
    %v117 = vld [vmem:[#allocation5 + $0x1d0] sm:$0xf]
    %v118 = vld [vmem:[#allocation5 + $0x1d8] sm:$0xf]
    %v119 = vld [vmem:[#allocation5 + $0x1e0] sm:$0xf]
    %v120 = vld [vmem:[#allocation5 + $0x1e8] sm:$0xf]
    %v121 = vld [vmem:[#allocation5 + $0x1f0] sm:$0xf]
    %v122 = vld [vmem:[#allocation5 + $0x1f8] sm:$0xf]
    %v123 = vld [vmem:[#allocation5 + $0x200] sm:$0xf]
    %v124 = vld [vmem:[#allocation5 + $0x208] sm:$0xf]
    %v125 = vld [vmem:[#allocation7] ss:$8 sm:$0x3]
    %s126 = scalar_lea.vmem [#allocation7], 1
    %v127 = vld [vmem:[%s126] ss:$8 sm:$0x3]
    %v128 = vld [vmem:[#allocation7 + $0x2] ss:$0 sm:$0xff]
    %v129 = vld [vmem:[#allocation2] sm:$0xff]
    %v130 = vpack.c.bf16 %v129, %v129
    %v132 = vperm.slane %v125, 0
    %v133 = vperm.slane %v125, 1
    %v138 = vunpack.c.l.b16 %v59
    %v139 = vunpack.c.h.b16 %v59
    %v140 = vunpack.c.l.b16 %v60
    %v141 = vunpack.c.h.b16 %v60
    %v142 = vpack.c.b16 %v140, %v138
    %v143 = vpack.c.b16 %v141, %v139
    %vm146 = vcmask 130048
    %v148 = vsel %vm146, %v130, 0
    %150 = vmatpush.bf16.msra.mxu0 0
    %151 = vmatpush.bf16.msra.mxu0 0
    %152 = vmatpush.bf16.msra.mxu0 0
    %153 = vmatpush.bf16.msra.mxu0 0
    %154 = vmatpush.bf16.msra.mxu0 0
    %155 = vmatpush.bf16.msra.mxu0 0
    %156 = vmatpush.bf16.msra.mxu0 0
    %157 = vmatpush.bf16.msra.mxu0 %v142
    %158 = vmatmul.bf16.gmra.mxu0 %v148
    %v159 = vpop.f32.mrf.mxu0
    %v160 = vadd.f32 %v132, %v159
    %v161 = vpop.f32.mrf.mxu0
    %162 = vdwg.mxu0
    %163 = vmatpush.bf16.msra.mxu0 0
    %164 = vmatpush.bf16.msra.mxu0 0
    %165 = vmatpush.bf16.msra.mxu0 0
    %166 = vmatpush.bf16.msra.mxu0 0
    %167 = vmatpush.bf16.msra.mxu0 0
    %168 = vmatpush.bf16.msra.mxu0 0
    %169 = vmatpush.bf16.msra.mxu0 0
    %170 = vmatpush.bf16.msra.mxu0 %v143
    %171 = vmatmul.bf16.gmra.mxu0 %v148
    %v172 = vpop.f32.mrf.mxu0
    %v173 = vadd.f32 %v133, %v172
    %v174 = vpop.f32.mrf.mxu0
    %175 = vdwg.mxu0
    %vm176 = vcmp.gt.f32.partialorder %v160, 0.0
    %vm177 = vcmp.gt.f32.partialorder %v173, 0.0
    %v178 = vmul.f32 %v160, 0.01
    %v179 = vmul.f32 %v173, 0.01
    %v180 = vsel %vm176, %v160, %v178
    %v181 = vsel %vm177, %v173, %v179
    %v182 = vpack.c.bf16 %v180, %v180
    %v183 = vpack.c.bf16 %v181, %v181
    %v185 = vperm.slane %v127, 0
    %v186 = vperm.slane %v127, 1
    %v221 = vunpack.c.l.b16 %v61
    %v222 = vunpack.c.h.b16 %v61
    %v223 = vunpack.c.l.b16 %v62
    %v224 = vunpack.c.h.b16 %v62
    %v225 = vunpack.c.l.b16 %v63
    %v226 = vunpack.c.h.b16 %v63
    %v227 = vunpack.c.l.b16 %v64
    %v228 = vunpack.c.h.b16 %v64
    %v229 = vunpack.c.l.b16 %v65
    %v230 = vunpack.c.h.b16 %v65
    %v231 = vunpack.c.l.b16 %v66
    %v232 = vunpack.c.h.b16 %v66
    %v233 = vunpack.c.l.b16 %v67
    %v234 = vunpack.c.h.b16 %v67
    %v235 = vunpack.c.l.b16 %v68
    %v236 = vunpack.c.h.b16 %v68
    %v237 = vunpack.c.l.b16 %v69
    %v238 = vunpack.c.h.b16 %v69
    %v239 = vunpack.c.l.b16 %v70
    %v240 = vunpack.c.h.b16 %v70
    %v241 = vunpack.c.l.b16 %v71
    %v242 = vunpack.c.h.b16 %v71
    %v243 = vunpack.c.l.b16 %v72
    %v244 = vunpack.c.h.b16 %v72
    %v245 = vunpack.c.l.b16 %v73
    %v246 = vunpack.c.h.b16 %v73
    %v247 = vunpack.c.l.b16 %v74
    %v248 = vunpack.c.h.b16 %v74
    %v249 = vunpack.c.l.b16 %v75
    %v250 = vunpack.c.h.b16 %v75
    %v251 = vunpack.c.l.b16 %v76
    %v252 = vunpack.c.h.b16 %v76
    %v253 = vunpack.c.l.b16 %v77
    %v254 = vunpack.c.h.b16 %v77
    %v255 = vunpack.c.l.b16 %v78
    %v256 = vunpack.c.h.b16 %v78
    %v257 = vunpack.c.l.b16 %v79
    %v258 = vunpack.c.h.b16 %v79
    %v259 = vunpack.c.l.b16 %v80
    %v260 = vunpack.c.h.b16 %v80
    %v261 = vunpack.c.l.b16 %v81
    %v262 = vunpack.c.h.b16 %v81
    %v263 = vunpack.c.l.b16 %v82
    %v264 = vunpack.c.h.b16 %v82
    %v265 = vunpack.c.l.b16 %v83
    %v266 = vunpack.c.h.b16 %v83
    %v267 = vunpack.c.l.b16 %v84
    %v268 = vunpack.c.h.b16 %v84
    %v269 = vunpack.c.l.b16 %v85
    %v270 = vunpack.c.h.b16 %v85
    %v271 = vunpack.c.l.b16 %v86
    %v272 = vunpack.c.h.b16 %v86
    %v273 = vunpack.c.l.b16 %v87
    %v274 = vunpack.c.h.b16 %v87
    %v275 = vunpack.c.l.b16 %v88
    %v276 = vunpack.c.h.b16 %v88
    %v277 = vunpack.c.l.b16 %v89
    %v278 = vunpack.c.h.b16 %v89
    %v279 = vunpack.c.l.b16 %v90
    %v280 = vunpack.c.h.b16 %v90
    %v281 = vunpack.c.l.b16 %v91
    %v282 = vunpack.c.h.b16 %v91
    %v283 = vunpack.c.l.b16 %v92
    %v284 = vunpack.c.h.b16 %v92
    %v285 = vpack.c.b16 %v223, %v221
    %v286 = vpack.c.b16 %v224, %v222
    %v287 = vpack.c.b16 %v227, %v225
    %v288 = vpack.c.b16 %v228, %v226
    %v289 = vpack.c.b16 %v231, %v229
    %v290 = vpack.c.b16 %v232, %v230
    %v291 = vpack.c.b16 %v235, %v233
    %v292 = vpack.c.b16 %v236, %v234
    %v293 = vpack.c.b16 %v239, %v237
    %v294 = vpack.c.b16 %v240, %v238
    %v295 = vpack.c.b16 %v243, %v241
    %v296 = vpack.c.b16 %v244, %v242
    %v297 = vpack.c.b16 %v247, %v245
    %v298 = vpack.c.b16 %v248, %v246
    %v299 = vpack.c.b16 %v251, %v249
    %v300 = vpack.c.b16 %v252, %v250
    %v301 = vpack.c.b16 %v255, %v253
    %v302 = vpack.c.b16 %v256, %v254
    %v303 = vpack.c.b16 %v259, %v257
    %v304 = vpack.c.b16 %v260, %v258
    %v305 = vpack.c.b16 %v263, %v261
    %v306 = vpack.c.b16 %v264, %v262
    %v307 = vpack.c.b16 %v267, %v265
    %v308 = vpack.c.b16 %v268, %v266
    %v309 = vpack.c.b16 %v271, %v269
    %v310 = vpack.c.b16 %v272, %v270
    %v311 = vpack.c.b16 %v275, %v273
    %v312 = vpack.c.b16 %v276, %v274
    %v313 = vpack.c.b16 %v279, %v277
    %v314 = vpack.c.b16 %v280, %v278
    %v315 = vpack.c.b16 %v283, %v281
    %v316 = vpack.c.b16 %v284, %v282
    %349 = vmatpush.bf16.msra.mxu0 %v299
    %350 = vmatpush.bf16.msra.mxu0 %v297
    %351 = vmatpush.bf16.msra.mxu0 %v295
    %352 = vmatpush.bf16.msra.mxu0 %v293
    %353 = vmatpush.bf16.msra.mxu0 %v291
    %354 = vmatpush.bf16.msra.mxu0 %v289
    %355 = vmatpush.bf16.msra.mxu0 %v287
    %356 = vmatpush.bf16.msra.mxu0 %v285
    %357 = vmatmul.bf16.gmra.mxu0 %v182
    %v358 = vpop.f32.mrf.mxu0
    %v359 = vadd.f32 %v185, %v358
    %v360 = vpop.f32.mrf.mxu0
    %361 = vdwg.mxu0
    %362 = vmatpush.bf16.msra.mxu0 %v315
    %363 = vmatpush.bf16.msra.mxu0 %v313
    %364 = vmatpush.bf16.msra.mxu0 %v311
    %365 = vmatpush.bf16.msra.mxu0 %v309
    %366 = vmatpush.bf16.msra.mxu0 %v307
    %367 = vmatpush.bf16.msra.mxu0 %v305
    %368 = vmatpush.bf16.msra.mxu0 %v303
    %369 = vmatpush.bf16.msra.mxu0 %v301
    %370 = vmatmul.bf16.gmra.mxu0 %v183
    %v371 = vpop.f32.mrf.mxu0
    %v372 = vadd.f32 %v359, %v371
    %v373 = vpop.f32.mrf.mxu0
    %374 = vdwg.mxu0
    %375 = vmatpush.bf16.msra.mxu0 %v300
    %376 = vmatpush.bf16.msra.mxu0 %v298
    %377 = vmatpush.bf16.msra.mxu0 %v296
    %378 = vmatpush.bf16.msra.mxu0 %v294
    %379 = vmatpush.bf16.msra.mxu0 %v292
    %380 = vmatpush.bf16.msra.mxu0 %v290
    %381 = vmatpush.bf16.msra.mxu0 %v288
    %382 = vmatpush.bf16.msra.mxu0 %v286
    %383 = vmatmul.bf16.gmra.mxu0 %v182
    %v384 = vpop.f32.mrf.mxu0
    %v385 = vadd.f32 %v186, %v384
    %v386 = vpop.f32.mrf.mxu0
    %387 = vdwg.mxu0
    %388 = vmatpush.bf16.msra.mxu0 %v316
    %389 = vmatpush.bf16.msra.mxu0 %v314
    %390 = vmatpush.bf16.msra.mxu0 %v312
    %391 = vmatpush.bf16.msra.mxu0 %v310
    %392 = vmatpush.bf16.msra.mxu0 %v308
    %393 = vmatpush.bf16.msra.mxu0 %v306
    %394 = vmatpush.bf16.msra.mxu0 %v304
    %395 = vmatpush.bf16.msra.mxu0 %v302
    %396 = vmatmul.bf16.gmra.mxu0 %v183
    %v397 = vpop.f32.mrf.mxu0
    %v398 = vadd.f32 %v385, %v397
    %v399 = vpop.f32.mrf.mxu0
    %400 = vdwg.mxu0
    %vm401 = vcmp.gt.f32.partialorder %v372, 0.0
    %vm402 = vcmp.gt.f32.partialorder %v398, 0.0
    %v403 = vmul.f32 %v372, 0.01
    %v404 = vmul.f32 %v398, 0.01
    %v405 = vsel %vm401, %v372, %v403
    %v406 = vsel %vm402, %v398, %v404
    %v407 = vpack.c.bf16 %v405, %v405
    %v408 = vpack.c.bf16 %v406, %v406
    %v441 = vunpack.c.l.b16 %v93
    %v442 = vunpack.c.l.b16 %v94
    %v443 = vunpack.c.l.b16 %v95
    %v444 = vunpack.c.l.b16 %v96
    %v445 = vunpack.c.l.b16 %v97
    %v446 = vunpack.c.l.b16 %v98
    %v447 = vunpack.c.l.b16 %v99
    %v448 = vunpack.c.l.b16 %v100
    %v449 = vunpack.c.l.b16 %v101
    %v450 = vunpack.c.l.b16 %v102
    %v451 = vunpack.c.l.b16 %v103
    %v452 = vunpack.c.l.b16 %v104
    %v453 = vunpack.c.l.b16 %v105
    %v454 = vunpack.c.l.b16 %v106
    %v455 = vunpack.c.l.b16 %v107
    %v456 = vunpack.c.l.b16 %v108
    %v457 = vunpack.c.l.b16 %v109
    %v458 = vunpack.c.l.b16 %v110
    %v459 = vunpack.c.l.b16 %v111
    %v460 = vunpack.c.l.b16 %v112
    %v461 = vunpack.c.l.b16 %v113
    %v462 = vunpack.c.l.b16 %v114
    %v463 = vunpack.c.l.b16 %v115
    %v464 = vunpack.c.l.b16 %v116
    %v465 = vunpack.c.l.b16 %v117
    %v466 = vunpack.c.l.b16 %v118
    %v467 = vunpack.c.l.b16 %v119
    %v468 = vunpack.c.l.b16 %v120
    %v469 = vunpack.c.l.b16 %v121
    %v470 = vunpack.c.l.b16 %v122
    %v471 = vunpack.c.l.b16 %v123
    %v472 = vunpack.c.l.b16 %v124
    %v473 = vpack.c.b16 %v442, %v441
    %v474 = vpack.c.b16 %v444, %v443
    %v475 = vpack.c.b16 %v446, %v445
    %v476 = vpack.c.b16 %v448, %v447
    %v477 = vpack.c.b16 %v450, %v449
    %v478 = vpack.c.b16 %v452, %v451
    %v479 = vpack.c.b16 %v454, %v453
    %v480 = vpack.c.b16 %v456, %v455
    %v481 = vpack.c.b16 %v458, %v457
    %v482 = vpack.c.b16 %v460, %v459
    %v483 = vpack.c.b16 %v462, %v461
    %v484 = vpack.c.b16 %v464, %v463
    %v485 = vpack.c.b16 %v466, %v465
    %v486 = vpack.c.b16 %v468, %v467
    %v487 = vpack.c.b16 %v470, %v469
    %v488 = vpack.c.b16 %v472, %v471
    %505 = vmatpush.bf16.msra.mxu0 %v480
    %506 = vmatpush.bf16.msra.mxu0 %v479
    %507 = vmatpush.bf16.msra.mxu0 %v478
    %508 = vmatpush.bf16.msra.mxu0 %v477
    %509 = vmatpush.bf16.msra.mxu0 %v476
    %510 = vmatpush.bf16.msra.mxu0 %v475
    %511 = vmatpush.bf16.msra.mxu0 %v474
    %512 = vmatpush.bf16.msra.mxu0 %v473
    %513 = vmatmul.bf16.gmra.mxu0 %v407
    %v514 = vpop.f32.mrf.mxu0
    %v515 = vadd.f32 %v128, %v514
    %v516 = vpop.f32.mrf.mxu0
    %517 = vdwg.mxu0
    %518 = vmatpush.bf16.msra.mxu0 %v488
    %519 = vmatpush.bf16.msra.mxu0 %v487
    %520 = vmatpush.bf16.msra.mxu0 %v486
    %521 = vmatpush.bf16.msra.mxu0 %v485
    %522 = vmatpush.bf16.msra.mxu0 %v484
    %523 = vmatpush.bf16.msra.mxu0 %v483
    %524 = vmatpush.bf16.msra.mxu0 %v482
    %525 = vmatpush.bf16.msra.mxu0 %v481
    %526 = vmatmul.bf16.gmra.mxu0 %v408
    %v527 = vpop.f32.mrf.mxu0
    %v528 = vadd.f32 %v515, %v527
    %v529 = vpop.f32.mrf.mxu0
    %530 = vdwg.mxu0
    %531 = vst [vmem:[#allocation8] sm:$0xff] %v528
    // Predicated region
    $region26: #{tpu_custom_call.1} parent=1 // pred_check
      _
    $region27: #{tpu_custom_call.1} parent=1 // pred_check_branch
      %533 = sbr.rel (0) target = $region29
    $region28: #{tpu_custom_call.1} parent=1 // pred_region
      %535 = vsyncadd [#allocation4], 0
      %s537 = sshll.u32 [#allocation8], 4
      %s538 = int_to_ptr.vmem [resolvable:$true] %s537
      %s539 = sshll.u32 %s3, 4
      %s540 = int_to_ptr.hbm [resolvable:$true] %s539
      %542 = dma.vmem_to_hbm [thread:$0]  %s538, 128, %s540, [#allocation4]
    $region29: #{tpu_custom_call.1} parent=1 // pred_fallthru
      _
    // Predicated region
    $region30: #{tpu_custom_call.1} parent=1 // pred_check
      _
    $region31: #{tpu_custom_call.1} parent=1 // pred_check_branch
      %544 = sbr.rel (0) target = $region33
    $region32: #{tpu_custom_call.1} parent=1 // pred_region
      %546 = dma.done [#allocation4], 128
    $region33: #{tpu_custom_call.1} parent=1 // pred_fallthru
      _
    %547 = vsyncpa [#allocation3], 1
    %548 = vsyncpa [#allocation6], 1
    %549 = vsyncpa [#allocation4], 1

</llo_original>
